<compile_context>
chip_gen: v7x
topology: tpu7x:2x2x1
jax: 0.10.0
libtpu: 0.0.40
codegen_flags: <defaults>
</compile_context>

<pallas_src>
import jax
import jax.numpy as jnp
import numpy as np
from jax.experimental import pallas as pl
from jax.experimental.pallas import tpu as pltpu

# ----- hparams (HParams equivalents) -----
N_LAYERS = 3
N_CHANNELS = 16            # must be even
KERNEL_SIZE = 3            # must be odd
N_IN_CHANNELS = 4
N_MEL_CHANNELS = 8
BATCH = 2
T = 64                     # sequence length  (BATCH * T = 128 lanes)


# ----------------------------- Pallas kernel -----------------------------
def wn_kernel(x_ref,                       # (n_in + n_mel, B*T)  stacked audio | spect
              w_sc_ref, b_sc_ref,          # fused start+cond: (nc + 2nc*L, n_in+n_mel), (nc+2nc*L, 1)
              w_in_ref,                    # (L, 2nc, K*nc)  tap-fused dilated-conv weights
              w_rsf_ref, b_rsf_ref,        # (L, nc + 2*n_in, nc), (L, nc + 2*n_in, 1)  end-fused res/skip
              b_out_ref,                   # (2*n_in, 1)   all skip/end biases folded together
              out_ref):                    # (2*n_in, B*T)
    nc = N_CHANNELS
    lanes = x_ref.shape[1]

    # start + cond 1x1 convs as ONE block-diagonal matmul over channels.
    sc = jnp.dot(w_sc_ref[...], x_ref[...],
                 preferred_element_type=jnp.float32) + b_sc_ref[...]
    audio = sc[:nc]                                   # (nc, lanes)
    res_acc = jnp.zeros((2 * N_IN_CHANNELS, lanes), jnp.float32)

    # time-within-sequence index for boundary masking (batch elements are
    # concatenated along the lane axis in contiguous blocks of T).
    t_local = jax.lax.broadcasted_iota(jnp.int32, (nc, lanes), 1) % T

    for i in range(N_LAYERS):
        dilation = 2 ** i

        # dilated "same" conv: build the K shifted operands with XLU rolls +
        # static masks, stack them, and hit the MXU once with the fused weight.
        taps = []
        for j in range(KERNEL_SIZE):
            off = (j - (KERNEL_SIZE - 1) // 2) * dilation
            if off == 0:
                taps.append(audio)
            else:
                rolled = pltpu.roll(audio, shift=(-off) % lanes, axis=1)   # x[:, t + off]
                valid = (t_local + off >= 0) & (t_local + off < T)
                taps.append(jnp.where(valid, rolled, 0.0))
        x_stack = jnp.concatenate(taps, axis=0)                            # (K*nc, lanes)
        in_res = jnp.dot(w_in_ref[i], x_stack,
                         preferred_element_type=jnp.float32)

        # fused_add_tanh_sigmoid_multiply (b_in already folded into cond bias rows)
        acts_in = in_res + sc[nc + i * 2 * nc: nc + (i + 1) * 2 * nc]
        acts = jnp.tanh(acts_in[:nc]) * jax.nn.sigmoid(acts_in[nc:])

        # res/skip 1x1 conv; the skip half is already composed with the end conv,
        # so rs[nc:] accumulates directly into the (2*n_in)-channel output.
        if i < N_LAYERS - 1:
            rs = jnp.dot(w_rsf_ref[i], acts,
                         preferred_element_type=jnp.float32) + b_rsf_ref[i]
            audio = audio + rs[:nc]
            res_acc = res_acc + rs[nc:]
        else:
            # last layer: only skip output exists (end-fused, biases folded into b_out)
            rs = jnp.dot(w_rsf_ref[i, nc:, :], acts,
                         preferred_element_type=jnp.float32)
            res_acc = res_acc + rs

    out_ref[...] = (res_acc + b_out_ref[...]).astype(out_ref.dtype)


# ----------------------------- wrapper -----------------------------
def wn_forward(audio, spect, kp):
    """audio: (B, n_in, T), spect: (B, n_mel, T), kp: prepared kernel params."""
    n, n_in, t = audio.shape
    lanes = n * t

    # fold batch into the lane axis: (C, B*T)  -- lane-dense layout plumbing.
    a2 = jnp.transpose(audio, (1, 0, 2)).reshape(n_in, lanes)
    s2 = jnp.transpose(spect, (1, 0, 2)).reshape(N_MEL_CHANNELS, lanes)
    x2 = jnp.concatenate([a2, s2], axis=0)            # (n_in + n_mel, B*T)

    vmem = pl.BlockSpec(memory_space=pltpu.MemorySpace.VMEM)
    out2 = pl.pallas_call(
        wn_kernel,
        out_shape=jax.ShapeDtypeStruct((2 * N_IN_CHANNELS, lanes), jnp.float32),
        in_specs=[vmem] * 7,
        out_specs=vmem,
    )(x2, kp['w_sc'], kp['b_sc'], kp['w_in'],
      kp['w_rsf'], kp['b_rsf'], kp['b_out'])

    # (2*n_in, B*T) -> (B, 2*n_in, T)
    return jnp.transpose(out2.reshape(2 * N_IN_CHANNELS, n, t), (1, 0, 2))


# ------------------- kernel-param preparation (fusions done once) -------------------
def prepare_kernel_params(p):
    nc = N_CHANNELS
    n_cond = 2 * nc * N_LAYERS
    n_out = 2 * N_IN_CHANNELS

    # block-diagonal fused start+cond weight over stacked (audio | spect) channels
    w_sc = jnp.zeros((nc + n_cond, N_IN_CHANNELS + N_MEL_CHANNELS), jnp.float32)
    w_sc = w_sc.at[:nc, :N_IN_CHANNELS].set(p['w_start'])
    w_sc = w_sc.at[nc:, N_IN_CHANNELS:].set(p['w_cond'])

    # fold per-layer dilated-conv biases into the matching cond-bias rows
    b_cond_folded = p['b_cond'] + p['b_in'].reshape(n_cond, 1)
    b_sc = jnp.concatenate([p['b_start'], b_cond_folded], axis=0)

    # fuse K taps into one (2nc, K*nc) weight per layer:
    # w_in (L, K, 2nc, nc) -> (L, 2nc, K, nc) -> (L, 2nc, K*nc)
    w_in_f = jnp.transpose(p['w_in'], (0, 2, 1, 3)).reshape(
        N_LAYERS, 2 * nc, KERNEL_SIZE * nc)

    # Fold the end 1x1 conv into each layer's skip weights:
    #   res = W_end @ (sum_i skip_i) + b_end
    #       = sum_i (W_end @ W_skip_i) @ acts_i  +  [W_end @ (sum_i b_skip_i) + b_end]
    w_end, b_end = p['w_end'], p['b_end']
    w_rsf, b_rsf = [], []
    skip_bias_sum = jnp.zeros((nc, 1), jnp.float32)
    for i in range(N_LAYERS):
        if i < N_LAYERS - 1:
            w_res, w_skip = p['w_rs'][i, :nc], p['w_rs'][i, nc:]
            b_res, b_skip = p['b_rs'][i, :nc], p['b_rs'][i, nc:]
            w_rsf.append(jnp.concatenate([w_res, w_end @ w_skip], axis=0))
            b_rsf.append(jnp.concatenate(
                [b_res, jnp.zeros((n_out, 1), jnp.float32)], axis=0))
        else:
            # last layer: res_skip has nc output channels, all of them are skip
            w_skip = p['w_rs'][i, :nc]
            b_skip = p['b_rs'][i, :nc]
            w_rsf.append(jnp.concatenate(
                [jnp.zeros((nc, nc), jnp.float32), w_end @ w_skip], axis=0))
            b_rsf.append(jnp.zeros((nc + n_out, 1), jnp.float32))
        skip_bias_sum = skip_bias_sum + b_skip
    b_out = b_end + w_end @ skip_bias_sum

    return {
        'w_sc': w_sc, 'b_sc': b_sc, 'w_in': w_in_f,
        'w_rsf': jnp.stack(w_rsf), 'b_rsf': jnp.stack(b_rsf), 'b_out': b_out,
    }


# ----------------------------- parameter init (deterministic) -----------------------------
def _weight_norm(v, g):
    # torch weight_norm(dim=0): W = g * V / ||V||, norm over all dims except dim 0
    norm = jnp.sqrt(jnp.sum(v * v, axis=tuple(range(1, v.ndim)), keepdims=True))
    return (g.reshape((-1,) + (1,) * (v.ndim - 1)) / norm) * v


def init_params(key):
    keys = iter(jax.random.split(key, 32))

    def nrm(shape, scale=0.1):
        return scale * jax.random.normal(next(keys), shape, jnp.float32)

    p = {}
    # start conv (weight-normed)
    v = nrm((N_CHANNELS, N_IN_CHANNELS))
    g = 1.0 + 0.1 * jax.random.normal(next(keys), (N_CHANNELS,), jnp.float32)
    p['w_start'] = _weight_norm(v, g)
    p['b_start'] = nrm((N_CHANNELS, 1))

    # cond layer (weight-normed)
    v = nrm((2 * N_CHANNELS * N_LAYERS, N_MEL_CHANNELS))
    g = 1.0 + 0.1 * jax.random.normal(next(keys), (2 * N_CHANNELS * N_LAYERS,), jnp.float32)
    p['w_cond'] = _weight_norm(v, g)
    p['b_cond'] = nrm((2 * N_CHANNELS * N_LAYERS, 1))

    # dilated in_layers, stored as (L, K, 2nc, nc)
    w_in, b_in = [], []
    for _ in range(N_LAYERS):
        v = nrm((2 * N_CHANNELS, N_CHANNELS, KERNEL_SIZE))
        g = 1.0 + 0.1 * jax.random.normal(next(keys), (2 * N_CHANNELS,), jnp.float32)
        w = _weight_norm(v, g)                       # (2nc, nc, K)
        w_in.append(jnp.transpose(w, (2, 0, 1)))     # (K, 2nc, nc)
        b_in.append(nrm((2 * N_CHANNELS, 1)))
    p['w_in'] = jnp.stack(w_in)
    p['b_in'] = jnp.stack(b_in)

    # res_skip layers; last layer has nc output channels -> zero-pad to 2nc rows
    # (kernel only ever touches the valid rows, so no wasted MXU work)
    w_rs, b_rs = [], []
    for i in range(N_LAYERS):
        rs_ch = 2 * N_CHANNELS if i < N_LAYERS - 1 else N_CHANNELS
        v = nrm((rs_ch, N_CHANNELS))
        g = 1.0 + 0.1 * jax.random.normal(next(keys), (rs_ch,), jnp.float32)
        w = _weight_norm(v, g)
        b = nrm((rs_ch, 1))
        if rs_ch < 2 * N_CHANNELS:
            w = jnp.concatenate([w, jnp.zeros((2 * N_CHANNELS - rs_ch, N_CHANNELS), jnp.float32)], 0)
            b = jnp.concatenate([b, jnp.zeros((2 * N_CHANNELS - rs_ch, 1), jnp.float32)], 0)
        w_rs.append(w)
        b_rs.append(b)
    p['w_rs'] = jnp.stack(w_rs)
    p['b_rs'] = jnp.stack(b_rs)

    # end conv: PyTorch __init__ zeros it; initialized non-zero here so the demo
    # output is non-trivial (forward semantics unchanged).
    p['w_end'] = nrm((2 * N_IN_CHANNELS, N_CHANNELS))
    p['b_end'] = nrm((2 * N_IN_CHANNELS, 1))
    return p


# ----------------------------- pure-JAX reference -----------------------------
def wn_reference(audio, spect, p):
    nc = N_CHANNELS

    def conv1x1(x, w, b):
        return jnp.einsum('oc,nct->not', w, x) + b[None]

    a = conv1x1(audio, p['w_start'], p['b_start'])
    out = jnp.zeros_like(a)
    sp = conv1x1(spect, p['w_cond'], p['b_cond'])
    for i in range(N_LAYERS):
        dil = 2 ** i
        pad = dil * (KERNEL_SIZE - 1) // 2
        ap = jnp.pad(a, ((0, 0), (0, 0), (pad, pad)))
        in_res = jnp.zeros((a.shape[0], 2 * nc, T), jnp.float32)
        for j in range(KERNEL_SIZE):
            in_res = in_res + jnp.einsum('oc,nct->not', p['w_in'][i, j],
                                         ap[:, :, j * dil:j * dil + T])
        in_res = in_res + p['b_in'][i][None]
        acts_in = in_res + sp[:, i * 2 * nc:(i + 1) * 2 * nc, :]
        acts = jnp.tanh(acts_in[:, :nc]) * jax.nn.sigmoid(acts_in[:, nc:])
        rs_ch = 2 * nc if i < N_LAYERS - 1 else nc
        rs = jnp.einsum('oc,nct->not', p['w_rs'][i][:rs_ch], acts) + p['b_rs'][i][:rs_ch][None]
        if i < N_LAYERS - 1:
            a = a + rs[:, :nc]
            out = out + rs[:, nc:]
        else:
            out = out + rs
    return conv1x1(out, p['w_end'], p['b_end'])


if __name__ == "__main__":
    key = jax.random.PRNGKey(0)
    kp_key, ka, ks = jax.random.split(key, 3)
    params = init_params(kp_key)
    audio = jax.random.normal(ka, (BATCH, N_IN_CHANNELS, T), jnp.float32)
    spect = jax.random.normal(ks, (BATCH, N_MEL_CHANNELS, T), jnp.float32)

    kparams = prepare_kernel_params(params)
    out = wn_forward(audio, spect, kparams)
    out = jax.block_until_ready(out)

    ref = wn_reference(audio, spect, params)
    assert out.shape == (BATCH, 2 * N_IN_CHANNELS, T)
    np.testing.assert_allclose(np.asarray(out), np.asarray(ref), rtol=1e-2, atol=1e-2)
    print("KERNEL_OK")
</pallas_src>

<mosaic_0001>
module attributes {stable_mosaic.version = 11 : i64} {
  func.func @wn_kernel(%arg0: memref<12x128xf32, #tpu.memory_space<vmem>>, %arg1: memref<112x12xf32, #tpu.memory_space<vmem>>, %arg2: memref<112x1xf32, #tpu.memory_space<vmem>>, %arg3: memref<3x32x48xf32, #tpu.memory_space<vmem>>, %arg4: memref<3x24x16xf32, #tpu.memory_space<vmem>>, %arg5: memref<3x24x1xf32, #tpu.memory_space<vmem>>, %arg6: memref<8x1xf32, #tpu.memory_space<vmem>>, %arg7: memref<8x128xf32, #tpu.memory_space<vmem>>) attributes {dimension_semantics = [], scalar_prefetch = 0 : i64, scratch_operands = 0 : i64, tpu.core_type = #tpu.core_type<tc>} {
    %c0 = arith.constant 0 : index
    %c0_0 = arith.constant 0 : index
    %0 = vector.load %arg1[%c0, %c0_0] : memref<112x12xf32, #tpu.memory_space<vmem>>, vector<112x12xf32>
    %c0_1 = arith.constant 0 : index
    %c0_2 = arith.constant 0 : index
    %1 = vector.load %arg0[%c0_1, %c0_2] : memref<12x128xf32, #tpu.memory_space<vmem>>, vector<12x128xf32>
    %cst = arith.constant dense<0.000000e+00> : vector<112x128xf32>
    %2 = tpu.matmul %0, %1, %cst {dimension_numbers = #tpu.dot_dimension_numbers<[1], [0], [0], [1], [0, 0, 1, 1], [], []>} : vector<112x12xf32>, vector<12x128xf32>, vector<112x128xf32> -> vector<112x128xf32>
    %c0_3 = arith.constant 0 : index
    %c0_4 = arith.constant 0 : index
    %3 = vector.load %arg2[%c0_3, %c0_4] : memref<112x1xf32, #tpu.memory_space<vmem>>, vector<112x1xf32>
    %4 = vector.broadcast %3 : vector<112x1xf32> to vector<112x128xf32>
    %5 = arith.addf %2, %4 : vector<112x128xf32>
    %6 = vector.extract_strided_slice %5 {offsets = [0, 0], sizes = [16, 128], strides = [1, 1]} : vector<112x128xf32> to vector<16x128xf32>
    %cst_5 = arith.constant 0.000000e+00 : f32
    %7 = vector.broadcast %cst_5 : f32 to vector<8x128xf32>
    %8 = tpu.iota {dimensions = array<i32: 1>} : vector<16x128xi32>
    %c64_i32 = arith.constant 64 : i32
    %c0_i32 = arith.constant 0 : i32
    %9 = arith.cmpi eq, %c64_i32, %c0_i32 : i32
    %c1_i32 = arith.constant 1 : i32
    %10 = arith.select %9, %c1_i32, %c64_i32 : i32
    %11 = vector.broadcast %10 : i32 to vector<16x128xi32>
    %12 = arith.remsi %8, %11 : vector<16x128xi32>
    %c0_i32_6 = arith.constant 0 : i32
    %13 = vector.broadcast %c0_i32_6 : i32 to vector<16x128xi32>
    %14 = arith.cmpi ne, %12, %13 : vector<16x128xi32>
    %c0_i32_7 = arith.constant 0 : i32
    %15 = vector.broadcast %c0_i32_7 : i32 to vector<16x128xi32>
    %16 = arith.cmpi slt, %12, %15 : vector<16x128xi32>
    %c0_i32_8 = arith.constant 0 : i32
    %17 = arith.cmpi slt, %10, %c0_i32_8 : i32
    %18 = vector.broadcast %17 : i1 to vector<16x128xi1>
    %19 = vector.broadcast %18 : vector<16x128xi1> to vector<16x128xi1>
    %20 = arith.xori %16, %19 : vector<16x128xi1>
    %21 = arith.andi %20, %14 : vector<16x128xi1>
    %22 = vector.broadcast %10 : i32 to vector<16x128xi32>
    %23 = arith.addi %12, %22 : vector<16x128xi32>
    %24 = arith.select %21, %23, %12 : vector<16x128xi1>, vector<16x128xi32>
    %c1_i32_9 = arith.constant 1 : i32
    %25 = tpu.dynamic_rotate %6 by %c1_i32_9 dim 1 : vector<16x128xf32>, i32 -> vector<16x128xf32>
    %c-1_i32 = arith.constant -1 : i32
    %26 = vector.broadcast %c-1_i32 : i32 to vector<16x128xi32>
    %27 = arith.addi %24, %26 : vector<16x128xi32>
    %c0_i32_10 = arith.constant 0 : i32
    %28 = vector.broadcast %c0_i32_10 : i32 to vector<16x128xi32>
    %29 = arith.cmpi sge, %27, %28 : vector<16x128xi32>
    %c-1_i32_11 = arith.constant -1 : i32
    %30 = vector.broadcast %c-1_i32_11 : i32 to vector<16x128xi32>
    %31 = arith.addi %24, %30 : vector<16x128xi32>
    %c64_i32_12 = arith.constant 64 : i32
    %32 = vector.broadcast %c64_i32_12 : i32 to vector<16x128xi32>
    %33 = arith.cmpi slt, %31, %32 : vector<16x128xi32>
    %34 = arith.andi %29, %33 : vector<16x128xi1>
    %cst_13 = arith.constant 0.000000e+00 : f32
    %35 = vector.broadcast %cst_13 : f32 to vector<16x128xf32>
    %36 = arith.select %34, %25, %35 : vector<16x128xi1>, vector<16x128xf32>
    %c127_i32 = arith.constant 127 : i32
    %37 = tpu.dynamic_rotate %6 by %c127_i32 dim 1 : vector<16x128xf32>, i32 -> vector<16x128xf32>
    %c1_i32_14 = arith.constant 1 : i32
    %38 = vector.broadcast %c1_i32_14 : i32 to vector<16x128xi32>
    %39 = arith.addi %24, %38 : vector<16x128xi32>
    %c0_i32_15 = arith.constant 0 : i32
    %40 = vector.broadcast %c0_i32_15 : i32 to vector<16x128xi32>
    %41 = arith.cmpi sge, %39, %40 : vector<16x128xi32>
    %c1_i32_16 = arith.constant 1 : i32
    %42 = vector.broadcast %c1_i32_16 : i32 to vector<16x128xi32>
    %43 = arith.addi %24, %42 : vector<16x128xi32>
    %c64_i32_17 = arith.constant 64 : i32
    %44 = vector.broadcast %c64_i32_17 : i32 to vector<16x128xi32>
    %45 = arith.cmpi slt, %43, %44 : vector<16x128xi32>
    %46 = arith.andi %41, %45 : vector<16x128xi1>
    %cst_18 = arith.constant 0.000000e+00 : f32
    %47 = vector.broadcast %cst_18 : f32 to vector<16x128xf32>
    %48 = arith.select %46, %37, %47 : vector<16x128xi1>, vector<16x128xf32>
    %49 = tpu.concatenate %36, %6, %48 in 0 : vector<16x128xf32>, vector<16x128xf32>, vector<16x128xf32> -> vector<48x128xf32>
    %c0_19 = arith.constant 0 : index
    %c0_20 = arith.constant 0 : index
    %c0_21 = arith.constant 0 : index
    %50 = vector.load %arg3[%c0_19, %c0_20, %c0_21] : memref<3x32x48xf32, #tpu.memory_space<vmem>>, vector<1x32x48xf32>
    %51 = vector.shape_cast %50 : vector<1x32x48xf32> to vector<32x48xf32>
    %cst_22 = arith.constant dense<0.000000e+00> : vector<32x128xf32>
    %52 = tpu.matmul %51, %49, %cst_22 {dimension_numbers = #tpu.dot_dimension_numbers<[1], [0], [0], [1], [0, 0, 1, 1], [], []>} : vector<32x48xf32>, vector<48x128xf32>, vector<32x128xf32> -> vector<32x128xf32>
    %53 = vector.extract_strided_slice %5 {offsets = [16, 0], sizes = [32, 128], strides = [1, 1]} : vector<112x128xf32> to vector<32x128xf32>
    %54 = arith.addf %52, %53 : vector<32x128xf32>
    %55 = vector.extract_strided_slice %54 {offsets = [0, 0], sizes = [16, 128], strides = [1, 1]} : vector<32x128xf32> to vector<16x128xf32>
    %56 = math.tanh %55 : vector<16x128xf32>
    %57 = vector.extract_strided_slice %54 {offsets = [16, 0], sizes = [16, 128], strides = [1, 1]} : vector<32x128xf32> to vector<16x128xf32>
    %58 = arith.negf %57 : vector<16x128xf32>
    %59 = math.exp %58 : vector<16x128xf32>
    %cst_23 = arith.constant 1.000000e+00 : f32
    %60 = vector.broadcast %cst_23 : f32 to vector<16x128xf32>
    %61 = arith.addf %60, %59 : vector<16x128xf32>
    %62 = arith.divf %60, %61 : vector<16x128xf32>
    %63 = arith.mulf %56, %62 : vector<16x128xf32>
    %c0_24 = arith.constant 0 : index
    %c0_25 = arith.constant 0 : index
    %c0_26 = arith.constant 0 : index
    %64 = vector.load %arg4[%c0_24, %c0_25, %c0_26] : memref<3x24x16xf32, #tpu.memory_space<vmem>>, vector<1x24x16xf32>
    %65 = vector.shape_cast %64 : vector<1x24x16xf32> to vector<24x16xf32>
    %cst_27 = arith.constant dense<0.000000e+00> : vector<24x128xf32>
    %66 = tpu.matmul %65, %63, %cst_27 {dimension_numbers = #tpu.dot_dimension_numbers<[1], [0], [0], [1], [0, 0, 1, 1], [], []>} : vector<24x16xf32>, vector<16x128xf32>, vector<24x128xf32> -> vector<24x128xf32>
    %c0_28 = arith.constant 0 : index
    %c0_29 = arith.constant 0 : index
    %c0_30 = arith.constant 0 : index
    %67 = vector.load %arg5[%c0_28, %c0_29, %c0_30] : memref<3x24x1xf32, #tpu.memory_space<vmem>>, vector<1x24x1xf32>
    %68 = vector.shape_cast %67 : vector<1x24x1xf32> to vector<24x1xf32>
    %69 = vector.broadcast %68 : vector<24x1xf32> to vector<24x128xf32>
    %70 = arith.addf %66, %69 : vector<24x128xf32>
    %71 = vector.extract_strided_slice %70 {offsets = [0, 0], sizes = [16, 128], strides = [1, 1]} : vector<24x128xf32> to vector<16x128xf32>
    %72 = arith.addf %6, %71 : vector<16x128xf32>
    %73 = vector.extract_strided_slice %70 {offsets = [16, 0], sizes = [8, 128], strides = [1, 1]} : vector<24x128xf32> to vector<8x128xf32>
    %74 = arith.addf %7, %73 : vector<8x128xf32>
    %c2_i32 = arith.constant 2 : i32
    %75 = tpu.dynamic_rotate %72 by %c2_i32 dim 1 : vector<16x128xf32>, i32 -> vector<16x128xf32>
    %c-2_i32 = arith.constant -2 : i32
    %76 = vector.broadcast %c-2_i32 : i32 to vector<16x128xi32>
    %77 = arith.addi %24, %76 : vector<16x128xi32>
    %c0_i32_31 = arith.constant 0 : i32
    %78 = vector.broadcast %c0_i32_31 : i32 to vector<16x128xi32>
    %79 = arith.cmpi sge, %77, %78 : vector<16x128xi32>
    %c-2_i32_32 = arith.constant -2 : i32
    %80 = vector.broadcast %c-2_i32_32 : i32 to vector<16x128xi32>
    %81 = arith.addi %24, %80 : vector<16x128xi32>
    %c64_i32_33 = arith.constant 64 : i32
    %82 = vector.broadcast %c64_i32_33 : i32 to vector<16x128xi32>
    %83 = arith.cmpi slt, %81, %82 : vector<16x128xi32>
    %84 = arith.andi %79, %83 : vector<16x128xi1>
    %cst_34 = arith.constant 0.000000e+00 : f32
    %85 = vector.broadcast %cst_34 : f32 to vector<16x128xf32>
    %86 = arith.select %84, %75, %85 : vector<16x128xi1>, vector<16x128xf32>
    %c126_i32 = arith.constant 126 : i32
    %87 = tpu.dynamic_rotate %72 by %c126_i32 dim 1 : vector<16x128xf32>, i32 -> vector<16x128xf32>
    %c2_i32_35 = arith.constant 2 : i32
    %88 = vector.broadcast %c2_i32_35 : i32 to vector<16x128xi32>
    %89 = arith.addi %24, %88 : vector<16x128xi32>
    %c0_i32_36 = arith.constant 0 : i32
    %90 = vector.broadcast %c0_i32_36 : i32 to vector<16x128xi32>
    %91 = arith.cmpi sge, %89, %90 : vector<16x128xi32>
    %c2_i32_37 = arith.constant 2 : i32
    %92 = vector.broadcast %c2_i32_37 : i32 to vector<16x128xi32>
    %93 = arith.addi %24, %92 : vector<16x128xi32>
    %c64_i32_38 = arith.constant 64 : i32
    %94 = vector.broadcast %c64_i32_38 : i32 to vector<16x128xi32>
    %95 = arith.cmpi slt, %93, %94 : vector<16x128xi32>
    %96 = arith.andi %91, %95 : vector<16x128xi1>
    %cst_39 = arith.constant 0.000000e+00 : f32
    %97 = vector.broadcast %cst_39 : f32 to vector<16x128xf32>
    %98 = arith.select %96, %87, %97 : vector<16x128xi1>, vector<16x128xf32>
    %99 = tpu.concatenate %86, %72, %98 in 0 : vector<16x128xf32>, vector<16x128xf32>, vector<16x128xf32> -> vector<48x128xf32>
    %c1 = arith.constant 1 : index
    %c0_40 = arith.constant 0 : index
    %c0_41 = arith.constant 0 : index
    %100 = vector.load %arg3[%c1, %c0_40, %c0_41] : memref<3x32x48xf32, #tpu.memory_space<vmem>>, vector<1x32x48xf32>
    %101 = vector.shape_cast %100 : vector<1x32x48xf32> to vector<32x48xf32>
    %cst_42 = arith.constant dense<0.000000e+00> : vector<32x128xf32>
    %102 = tpu.matmul %101, %99, %cst_42 {dimension_numbers = #tpu.dot_dimension_numbers<[1], [0], [0], [1], [0, 0, 1, 1], [], []>} : vector<32x48xf32>, vector<48x128xf32>, vector<32x128xf32> -> vector<32x128xf32>
    %103 = vector.extract_strided_slice %5 {offsets = [48, 0], sizes = [32, 128], strides = [1, 1]} : vector<112x128xf32> to vector<32x128xf32>
    %104 = arith.addf %102, %103 : vector<32x128xf32>
    %105 = vector.extract_strided_slice %104 {offsets = [0, 0], sizes = [16, 128], strides = [1, 1]} : vector<32x128xf32> to vector<16x128xf32>
    %106 = math.tanh %105 : vector<16x128xf32>
    %107 = vector.extract_strided_slice %104 {offsets = [16, 0], sizes = [16, 128], strides = [1, 1]} : vector<32x128xf32> to vector<16x128xf32>
    %108 = arith.negf %107 : vector<16x128xf32>
    %109 = math.exp %108 : vector<16x128xf32>
    %cst_43 = arith.constant 1.000000e+00 : f32
    %110 = vector.broadcast %cst_43 : f32 to vector<16x128xf32>
    %111 = arith.addf %110, %109 : vector<16x128xf32>
    %112 = arith.divf %110, %111 : vector<16x128xf32>
    %113 = arith.mulf %106, %112 : vector<16x128xf32>
    %c1_44 = arith.constant 1 : index
    %c0_45 = arith.constant 0 : index
    %c0_46 = arith.constant 0 : index
    %114 = vector.load %arg4[%c1_44, %c0_45, %c0_46] : memref<3x24x16xf32, #tpu.memory_space<vmem>>, vector<1x24x16xf32>
    %115 = vector.shape_cast %114 : vector<1x24x16xf32> to vector<24x16xf32>
    %cst_47 = arith.constant dense<0.000000e+00> : vector<24x128xf32>
    %116 = tpu.matmul %115, %113, %cst_47 {dimension_numbers = #tpu.dot_dimension_numbers<[1], [0], [0], [1], [0, 0, 1, 1], [], []>} : vector<24x16xf32>, vector<16x128xf32>, vector<24x128xf32> -> vector<24x128xf32>
    %c1_48 = arith.constant 1 : index
    %c0_49 = arith.constant 0 : index
    %c0_50 = arith.constant 0 : index
    %117 = vector.load %arg5[%c1_48, %c0_49, %c0_50] : memref<3x24x1xf32, #tpu.memory_space<vmem>>, vector<1x24x1xf32>
    %118 = vector.shape_cast %117 : vector<1x24x1xf32> to vector<24x1xf32>
    %119 = vector.broadcast %118 : vector<24x1xf32> to vector<24x128xf32>
    %120 = arith.addf %116, %119 : vector<24x128xf32>
    %121 = vector.extract_strided_slice %120 {offsets = [0, 0], sizes = [16, 128], strides = [1, 1]} : vector<24x128xf32> to vector<16x128xf32>
    %122 = arith.addf %72, %121 : vector<16x128xf32>
    %123 = vector.extract_strided_slice %120 {offsets = [16, 0], sizes = [8, 128], strides = [1, 1]} : vector<24x128xf32> to vector<8x128xf32>
    %124 = arith.addf %74, %123 : vector<8x128xf32>
    %c4_i32 = arith.constant 4 : i32
    %125 = tpu.dynamic_rotate %122 by %c4_i32 dim 1 : vector<16x128xf32>, i32 -> vector<16x128xf32>
    %c-4_i32 = arith.constant -4 : i32
    %126 = vector.broadcast %c-4_i32 : i32 to vector<16x128xi32>
    %127 = arith.addi %24, %126 : vector<16x128xi32>
    %c0_i32_51 = arith.constant 0 : i32
    %128 = vector.broadcast %c0_i32_51 : i32 to vector<16x128xi32>
    %129 = arith.cmpi sge, %127, %128 : vector<16x128xi32>
    %c-4_i32_52 = arith.constant -4 : i32
    %130 = vector.broadcast %c-4_i32_52 : i32 to vector<16x128xi32>
    %131 = arith.addi %24, %130 : vector<16x128xi32>
    %c64_i32_53 = arith.constant 64 : i32
    %132 = vector.broadcast %c64_i32_53 : i32 to vector<16x128xi32>
    %133 = arith.cmpi slt, %131, %132 : vector<16x128xi32>
    %134 = arith.andi %129, %133 : vector<16x128xi1>
    %cst_54 = arith.constant 0.000000e+00 : f32
    %135 = vector.broadcast %cst_54 : f32 to vector<16x128xf32>
    %136 = arith.select %134, %125, %135 : vector<16x128xi1>, vector<16x128xf32>
    %c124_i32 = arith.constant 124 : i32
    %137 = tpu.dynamic_rotate %122 by %c124_i32 dim 1 : vector<16x128xf32>, i32 -> vector<16x128xf32>
    %c4_i32_55 = arith.constant 4 : i32
    %138 = vector.broadcast %c4_i32_55 : i32 to vector<16x128xi32>
    %139 = arith.addi %24, %138 : vector<16x128xi32>
    %c0_i32_56 = arith.constant 0 : i32
    %140 = vector.broadcast %c0_i32_56 : i32 to vector<16x128xi32>
    %141 = arith.cmpi sge, %139, %140 : vector<16x128xi32>
    %c4_i32_57 = arith.constant 4 : i32
    %142 = vector.broadcast %c4_i32_57 : i32 to vector<16x128xi32>
    %143 = arith.addi %24, %142 : vector<16x128xi32>
    %c64_i32_58 = arith.constant 64 : i32
    %144 = vector.broadcast %c64_i32_58 : i32 to vector<16x128xi32>
    %145 = arith.cmpi slt, %143, %144 : vector<16x128xi32>
    %146 = arith.andi %141, %145 : vector<16x128xi1>
    %cst_59 = arith.constant 0.000000e+00 : f32
    %147 = vector.broadcast %cst_59 : f32 to vector<16x128xf32>
    %148 = arith.select %146, %137, %147 : vector<16x128xi1>, vector<16x128xf32>
    %149 = tpu.concatenate %136, %122, %148 in 0 : vector<16x128xf32>, vector<16x128xf32>, vector<16x128xf32> -> vector<48x128xf32>
    %c2 = arith.constant 2 : index
    %c0_60 = arith.constant 0 : index
    %c0_61 = arith.constant 0 : index
    %150 = vector.load %arg3[%c2, %c0_60, %c0_61] : memref<3x32x48xf32, #tpu.memory_space<vmem>>, vector<1x32x48xf32>
    %151 = vector.shape_cast %150 : vector<1x32x48xf32> to vector<32x48xf32>
    %cst_62 = arith.constant dense<0.000000e+00> : vector<32x128xf32>
    %152 = tpu.matmul %151, %149, %cst_62 {dimension_numbers = #tpu.dot_dimension_numbers<[1], [0], [0], [1], [0, 0, 1, 1], [], []>} : vector<32x48xf32>, vector<48x128xf32>, vector<32x128xf32> -> vector<32x128xf32>
    %153 = vector.extract_strided_slice %5 {offsets = [80, 0], sizes = [32, 128], strides = [1, 1]} : vector<112x128xf32> to vector<32x128xf32>
    %154 = arith.addf %152, %153 : vector<32x128xf32>
    %155 = vector.extract_strided_slice %154 {offsets = [0, 0], sizes = [16, 128], strides = [1, 1]} : vector<32x128xf32> to vector<16x128xf32>
    %156 = math.tanh %155 : vector<16x128xf32>
    %157 = vector.extract_strided_slice %154 {offsets = [16, 0], sizes = [16, 128], strides = [1, 1]} : vector<32x128xf32> to vector<16x128xf32>
    %158 = arith.negf %157 : vector<16x128xf32>
    %159 = math.exp %158 : vector<16x128xf32>
    %cst_63 = arith.constant 1.000000e+00 : f32
    %160 = vector.broadcast %cst_63 : f32 to vector<16x128xf32>
    %161 = arith.addf %160, %159 : vector<16x128xf32>
    %162 = arith.divf %160, %161 : vector<16x128xf32>
    %163 = arith.mulf %156, %162 : vector<16x128xf32>
    %c2_64 = arith.constant 2 : index
    %c16 = arith.constant 16 : index
    %c0_65 = arith.constant 0 : index
    %164 = vector.load %arg4[%c2_64, %c16, %c0_65] : memref<3x24x16xf32, #tpu.memory_space<vmem>>, vector<1x8x16xf32>
    %165 = vector.shape_cast %164 : vector<1x8x16xf32> to vector<8x16xf32>
    %cst_66 = arith.constant dense<0.000000e+00> : vector<8x128xf32>
    %166 = tpu.matmul %165, %163, %cst_66 {dimension_numbers = #tpu.dot_dimension_numbers<[1], [0], [0], [1], [0, 0, 1, 1], [], []>} : vector<8x16xf32>, vector<16x128xf32>, vector<8x128xf32> -> vector<8x128xf32>
    %167 = arith.addf %124, %166 : vector<8x128xf32>
    %c0_67 = arith.constant 0 : index
    %c0_68 = arith.constant 0 : index
    %168 = vector.load %arg6[%c0_67, %c0_68] : memref<8x1xf32, #tpu.memory_space<vmem>>, vector<8x1xf32>
    %169 = vector.broadcast %168 : vector<8x1xf32> to vector<8x128xf32>
    %170 = arith.addf %167, %169 : vector<8x128xf32>
    %c0_69 = arith.constant 0 : index
    %c0_70 = arith.constant 0 : index
    %171 = vector.load %arg7[%c0_69, %c0_70] : memref<8x128xf32, #tpu.memory_space<vmem>>, vector<8x128xf32>
    tpu.vector_store %arg7[%c0_69, %c0_70], %170 {strides = array<i32>} : memref<8x128xf32, #tpu.memory_space<vmem>>, vector<8x128xf32>,
    return
  }
}

</mosaic_0001>

<llo_original>
// kernel: tpu_custom_call.1
$region0: #{tpu_custom_call.1}
  #allocation0 [shape = 'u32[]', space=smem, size = 0x4, offset = 0x4, fixed_abs, tag = 'smem constant byte address 0x4 - core index']
  #allocation1 [shape = 'u32[144,128]{1,0:T(1,128)}', space=vmem, size = 0x12000, scoped, tag = 'internal scratch']
  %s0 = inlined_call_operand.vmem [shape: f32[12,128], index: 0, kind: input, shape index: {}]
  %s1 = inlined_call_operand.vmem [shape: f32[112,12], index: 1, kind: input, shape index: {}]
  %s2 = inlined_call_operand.vmem [shape: f32[112,1], index: 2, kind: input, shape index: {}]
  %s3 = inlined_call_operand.vmem [shape: f32[3,32,48], index: 3, kind: input, shape index: {}]
  %s4 = inlined_call_operand.vmem [shape: f32[3,24,16], index: 4, kind: input, shape index: {}]
  %s5 = inlined_call_operand.vmem [shape: f32[3,24,1], index: 5, kind: input, shape index: {}]
  %s6 = inlined_call_operand.vmem [shape: f32[8,1], index: 6, kind: input, shape index: {}]
  %s7 = inlined_call_operand.hbm [shape: f32[8,128], index: 7, kind: output, shape index: {}]
  %s8 = sld [smem:[#allocation0]]
  $region38: #{tpu_custom_call.1} parent=0
    _
  %s10 = ssub.s32 1, %s8
  %s11 = scalar_select 0, %s10, %s8
  $region1: #{tpu_custom_call.1} parent=0
    #allocation2 [shape = 'u8[4096]{0}', space=vmem, size = 0x1000, scoped, tag = 'output window, operand 0, single buffered']
    #allocation3 [shape = 's32[1]{0}', space=sflag, size = 0x4, scoped, tag = 'scoped memory for tpu_custom_call.1']
    %12 = vsyncpa [#allocation3], 0
    // Predicated region
    $region2: #{tpu_custom_call.1} parent=1 // pred_check
      _
    $region3: #{tpu_custom_call.1} parent=1 // pred_check_branch
      %14 = sbr.rel (0) target = $region5
    $region4: #{tpu_custom_call.1} parent=1 // pred_region
      _
    $region5: #{tpu_custom_call.1} parent=1 // pred_fallthru
      _
    // Predicated region
    $region6: #{tpu_custom_call.1} parent=1 // pred_check
      _
    $region7: #{tpu_custom_call.1} parent=1 // pred_check_branch
      %16 = sbr.rel (0) target = $region9
    $region8: #{tpu_custom_call.1} parent=1 // pred_region
      _
    $region9: #{tpu_custom_call.1} parent=1 // pred_fallthru
      _
    // Predicated region
    $region10: #{tpu_custom_call.1} parent=1 // pred_check
      _
    $region11: #{tpu_custom_call.1} parent=1 // pred_check_branch
      %18 = sbr.rel (0) target = $region13
    $region12: #{tpu_custom_call.1} parent=1 // pred_region
      _
    $region13: #{tpu_custom_call.1} parent=1 // pred_fallthru
      _
    // Predicated region
    $region14: #{tpu_custom_call.1} parent=1 // pred_check
      _
    $region15: #{tpu_custom_call.1} parent=1 // pred_check_branch
      %20 = sbr.rel (0) target = $region17
    $region16: #{tpu_custom_call.1} parent=1 // pred_region
      _
    $region17: #{tpu_custom_call.1} parent=1 // pred_fallthru
      _
    // Predicated region
    $region18: #{tpu_custom_call.1} parent=1 // pred_check
      _
    $region19: #{tpu_custom_call.1} parent=1 // pred_check_branch
      %22 = sbr.rel (0) target = $region21
    $region20: #{tpu_custom_call.1} parent=1 // pred_region
      _
    $region21: #{tpu_custom_call.1} parent=1 // pred_fallthru
      _
    // Predicated region
    $region22: #{tpu_custom_call.1} parent=1 // pred_check
      _
    $region23: #{tpu_custom_call.1} parent=1 // pred_check_branch
      %24 = sbr.rel (0) target = $region25
    $region24: #{tpu_custom_call.1} parent=1 // pred_region
      _
    $region25: #{tpu_custom_call.1} parent=1 // pred_fallthru
      _
    // Predicated region
    $region26: #{tpu_custom_call.1} parent=1 // pred_check
      _
    $region27: #{tpu_custom_call.1} parent=1 // pred_check_branch
      %26 = sbr.rel (0) target = $region29
    $region28: #{tpu_custom_call.1} parent=1 // pred_region
      _
    $region29: #{tpu_custom_call.1} parent=1 // pred_fallthru
      _
    %v27 = vld [vmem:[%s1] sm:$0xff]
    %v28 = vld [vmem:[%s1 + $0x8] sm:$0xff]
    %v29 = vld [vmem:[%s1 + $0x10] sm:$0xff]
    %v30 = vld [vmem:[%s1 + $0x18] sm:$0xff]
    %v31 = vld [vmem:[%s1 + $0x20] sm:$0xff]
    %v32 = vld [vmem:[%s1 + $0x28] sm:$0xff]
    %v33 = vld [vmem:[%s1 + $0x30] sm:$0xff]
    %v34 = vld [vmem:[%s1 + $0x38] sm:$0xff]
    %v35 = vld [vmem:[%s1 + $0x40] sm:$0xff]
    %v36 = vld [vmem:[%s1 + $0x48] sm:$0xff]
    %v37 = vld [vmem:[%s1 + $0x50] sm:$0xff]
    %v38 = vld [vmem:[%s1 + $0x58] sm:$0xff]
    %v39 = vld [vmem:[%s1 + $0x60] sm:$0xff]
    %v40 = vld [vmem:[%s1 + $0x68] sm:$0xff]
    %v41 = vld [vmem:[%s0] sm:$0xff]
    %v42 = vld [vmem:[%s0 + $0x8] sm:$0xf]
    %v43 = vld [vmem:[%s2] sm:$0xff]
    %v44 = vld [vmem:[%s2 + $0x8] sm:$0xff]
    %v45 = vld [vmem:[%s2 + $0x10] sm:$0xff]
    %v46 = vld [vmem:[%s2 + $0x18] sm:$0xff]
    %v47 = vld [vmem:[%s2 + $0x20] sm:$0xff]
    %v48 = vld [vmem:[%s2 + $0x28] sm:$0xff]
    %v49 = vld [vmem:[%s2 + $0x30] sm:$0xff]
    %v50 = vld [vmem:[%s2 + $0x38] sm:$0xff]
    %v51 = vld [vmem:[%s2 + $0x40] sm:$0xff]
    %v52 = vld [vmem:[%s2 + $0x48] sm:$0xff]
    %v53 = vld [vmem:[%s2 + $0x50] sm:$0xff]
    %v54 = vld [vmem:[%s2 + $0x58] sm:$0xff]
    %v55 = vld [vmem:[%s2 + $0x60] sm:$0xff]
    %v56 = vld [vmem:[%s2 + $0x68] sm:$0xff]
    %58 = vset.pattern.permute.xlu0 0
    %59 = vperm.xlu0 %58, %v43
    %v60 = vpop.permute.xlu0 %59
    %63 = vset.pattern.permute.xlu0 0
    %64 = vperm.xlu0 %63, %v44
    %v65 = vpop.permute.xlu0 %64
    %68 = vset.pattern.permute.xlu0 0
    %69 = vperm.xlu0 %68, %v45
    %v70 = vpop.permute.xlu0 %69
    %73 = vset.pattern.permute.xlu0 0
    %74 = vperm.xlu0 %73, %v46
    %v75 = vpop.permute.xlu0 %74
    %78 = vset.pattern.permute.xlu0 0
    %79 = vperm.xlu0 %78, %v47
    %v80 = vpop.permute.xlu0 %79
    %83 = vset.pattern.permute.xlu0 0
    %84 = vperm.xlu0 %83, %v48
    %v85 = vpop.permute.xlu0 %84
    %88 = vset.pattern.permute.xlu0 0
    %89 = vperm.xlu0 %88, %v49
    %v90 = vpop.permute.xlu0 %89
    %93 = vset.pattern.permute.xlu0 0
    %94 = vperm.xlu0 %93, %v50
    %v95 = vpop.permute.xlu0 %94
    %98 = vset.pattern.permute.xlu0 0
    %99 = vperm.xlu0 %98, %v51
    %v100 = vpop.permute.xlu0 %99
    %103 = vset.pattern.permute.xlu0 0
    %104 = vperm.xlu0 %103, %v52
    %v105 = vpop.permute.xlu0 %104
    %108 = vset.pattern.permute.xlu0 0
    %109 = vperm.xlu0 %108, %v53
    %v110 = vpop.permute.xlu0 %109
    %113 = vset.pattern.permute.xlu0 0
    %114 = vperm.xlu0 %113, %v54
    %v115 = vpop.permute.xlu0 %114
    %118 = vset.pattern.permute.xlu0 0
    %119 = vperm.xlu0 %118, %v55
    %v120 = vpop.permute.xlu0 %119
    %123 = vset.pattern.permute.xlu0 0
    %124 = vperm.xlu0 %123, %v56
    %v125 = vpop.permute.xlu0 %124
    %vm127 = vcmask 97280
    %v129 = vsel %vm127, %v27, 0
    %v132 = vsel %vm127, %v28, 0
    %v135 = vsel %vm127, %v29, 0
    %v138 = vsel %vm127, %v30, 0
    %v141 = vsel %vm127, %v31, 0
    %v144 = vsel %vm127, %v32, 0
    %v147 = vsel %vm127, %v33, 0
    %v150 = vsel %vm127, %v34, 0
    %v153 = vsel %vm127, %v35, 0
    %v156 = vsel %vm127, %v36, 0
    %v159 = vsel %vm127, %v37, 0
    %v162 = vsel %vm127, %v38, 0
    %v165 = vsel %vm127, %v39, 0
    %v168 = vsel %vm127, %v40, 0
    %vm170 = vcmask 1043456
    %v172 = vsel %vm170, %v42, 0
    %174 = vmatprep.subr.mxu0 0.0
    %175 = vmatpush1.msra.mxu0 %v41
    %176 = vmatprep.subr.mxu0 0.0
    %177 = vmatpush1.msra.mxu0 %v172
    %178 = vmatprep.subr.mxu0 0.0
    %179 = vmatpush1.msra.mxu0 0.0
    %180 = vmatprep.subr.mxu0 0.0
    %181 = vmatpush1.msra.mxu0 0.0
    %182 = vmatprep.subr.mxu0 0.0
    %183 = vmatpush1.msra.mxu0 0.0
    %184 = vmatprep.subr.mxu0 0.0
    %185 = vmatpush1.msra.mxu0 0.0
    %186 = vmatprep.subr.mxu0 0.0
    %187 = vmatpush1.msra.mxu0 0.0
    %188 = vmatprep.subr.mxu0 0.0
    %189 = vmatpush1.msra.mxu0 0.0
    %190 = vmatprep.subr.mxu0 0.0
    %191 = vmatpush1.msra.mxu0 0.0
    %192 = vmatprep.subr.mxu0 0.0
    %193 = vmatpush1.msra.mxu0 0.0
    %194 = vmatprep.subr.mxu0 0.0
    %195 = vmatpush1.msra.mxu0 0.0
    %196 = vmatprep.subr.mxu0 0.0
    %197 = vmatpush1.msra.mxu0 0.0
    %198 = vmatprep.subr.mxu0 0.0
    %199 = vmatpush1.msra.mxu0 0.0
    %200 = vmatprep.subr.mxu0 0.0
    %201 = vmatpush1.msra.mxu0 0.0
    %202 = vmatprep.subr.mxu0 0.0
    %203 = vmatpush1.msra.mxu0 0.0
    %204 = vmatprep.subr.mxu0 0.0
    %205 = vmatpush1.msra.mxu0 0.0
    %206 = vmatprep.subr.mxu0 0.0
    %207 = vmatpush1.msra.mxu0 0.0
    %208 = vmatprep.subr.mxu0 0.0
    %209 = vmatpush1.msra.mxu0 0.0
    %210 = vmatprep.subr.mxu0 0.0
    %211 = vmatpush1.msra.mxu0 0.0
    %212 = vmatprep.subr.mxu0 0.0
    %213 = vmatpush1.msra.mxu0 0.0
    %214 = vmatprep.subr.mxu0 0.0
    %215 = vmatpush1.msra.mxu0 0.0
    %216 = vmatprep.subr.mxu0 0.0
    %217 = vmatpush1.msra.mxu0 0.0
    %218 = vmatprep.subr.mxu0 0.0
    %219 = vmatpush1.msra.mxu0 0.0
    %220 = vmatprep.subr.mxu0 0.0
    %221 = vmatpush1.msra.mxu0 0.0
    %222 = vmatprep.subr.mxu0 0.0
    %223 = vmatpush1.msra.mxu0 0.0
    %224 = vmatprep.subr.mxu0 0.0
    %225 = vmatpush1.msra.mxu0 0.0
    %226 = vmatprep.subr.mxu0 0.0
    %227 = vmatpush1.msra.mxu0 0.0
    %228 = vmatprep.subr.mxu0 0.0
    %229 = vmatpush1.msra.mxu0 0.0
    %230 = vmatprep.subr.mxu0 0.0
    %231 = vmatpush1.msra.mxu0 0.0
    %232 = vmatprep.subr.mxu0 0.0
    %233 = vmatpush1.msra.mxu0 0.0
    %234 = vmatprep.subr.mxu0 0.0
    %235 = vmatpush1.msra.mxu0 0.0
    %236 = vmatprep.subr.mxu0 0.0
    %237 = vmatpush1.msra.mxu0 0.0
    %238 = vmatprep.mubr.f32.mxu0 0.0
    %239 = vmatmul.mubr.f32.gmra.mrb[0].mxu0 %v129
    %v240 = vpop.f32.mrb[0].mxu0
    %v241 = vadd.f32 %v60, %v240
    %v242 = vpop.f32.mrb[0].mxu0
    %243 = vmatprep.mubr.f32.mxu0 0.0
    %244 = vmatmul.mubr.f32.gmra.mrb[0].mxu0 %v132
    %v245 = vpop.f32.mrb[0].mxu0
    %v246 = vadd.f32 %v65, %v245
    %v247 = vpop.f32.mrb[0].mxu0
    %248 = vmatprep.mubr.f32.mxu0 0.0
    %249 = vmatmul.mubr.f32.gmra.mrb[0].mxu0 %v135
    %v250 = vpop.f32.mrb[0].mxu0
    %v251 = vadd.f32 %v70, %v250
    %v252 = vpop.f32.mrb[0].mxu0
    %253 = vmatprep.mubr.f32.mxu0 0.0
    %254 = vmatmul.mubr.f32.gmra.mrb[0].mxu0 %v138
    %v255 = vpop.f32.mrb[0].mxu0
    %v256 = vadd.f32 %v75, %v255
    %v257 = vpop.f32.mrb[0].mxu0
    %258 = vmatprep.mubr.f32.mxu0 0.0
    %259 = vmatmul.mubr.f32.gmra.mrb[0].mxu0 %v141
    %v260 = vpop.f32.mrb[0].mxu0
    %v261 = vadd.f32 %v80, %v260
    %v262 = vpop.f32.mrb[0].mxu0
    %263 = vmatprep.mubr.f32.mxu0 0.0
    %264 = vmatmul.mubr.f32.gmra.mrb[0].mxu0 %v144
    %v265 = vpop.f32.mrb[0].mxu0
    %v266 = vadd.f32 %v85, %v265
    %v267 = vpop.f32.mrb[0].mxu0
    %268 = vmatprep.mubr.f32.mxu0 0.0
    %269 = vmatmul.mubr.f32.gmra.mrb[0].mxu0 %v147
    %v270 = vpop.f32.mrb[0].mxu0
    %v271 = vadd.f32 %v90, %v270
    %v272 = vpop.f32.mrb[0].mxu0
    %273 = vmatprep.mubr.f32.mxu0 0.0
    %274 = vmatmul.mubr.f32.gmra.mrb[0].mxu0 %v150
    %v275 = vpop.f32.mrb[0].mxu0
    %v276 = vadd.f32 %v95, %v275
    %v277 = vpop.f32.mrb[0].mxu0
    %278 = vmatprep.mubr.f32.mxu0 0.0
    %279 = vmatmul.mubr.f32.gmra.mrb[0].mxu0 %v153
    %v280 = vpop.f32.mrb[0].mxu0
    %v281 = vadd.f32 %v100, %v280
    %v282 = vpop.f32.mrb[0].mxu0
    %283 = vmatprep.mubr.f32.mxu0 0.0
    %284 = vmatmul.mubr.f32.gmra.mrb[0].mxu0 %v156
    %v285 = vpop.f32.mrb[0].mxu0
    %v286 = vadd.f32 %v105, %v285
    %v287 = vpop.f32.mrb[0].mxu0
    %288 = vmatprep.mubr.f32.mxu0 0.0
    %289 = vmatmul.mubr.f32.gmra.mrb[0].mxu0 %v159
    %v290 = vpop.f32.mrb[0].mxu0
    %v291 = vadd.f32 %v110, %v290
    %v292 = vpop.f32.mrb[0].mxu0
    %293 = vmatprep.mubr.f32.mxu0 0.0
    %294 = vmatmul.mubr.f32.gmra.mrb[0].mxu0 %v162
    %v295 = vpop.f32.mrb[0].mxu0
    %v296 = vadd.f32 %v115, %v295
    %v297 = vpop.f32.mrb[0].mxu0
    %298 = vmatprep.mubr.f32.mxu0 0.0
    %299 = vmatmul.mubr.f32.gmra.mrb[0].mxu0 %v165
    %v300 = vpop.f32.mrb[0].mxu0
    %v301 = vadd.f32 %v120, %v300
    %v302 = vpop.f32.mrb[0].mxu0
    %303 = vmatprep.mubr.f32.mxu0 0.0
    %304 = vmatmul.mubr.f32.gmra.mrb[0].mxu0 %v168
    %v305 = vpop.f32.mrb[0].mxu0
    %v306 = vadd.f32 %v125, %v305
    %v307 = vpop.f32.mrb[0].mxu0
    %308 = vdwg.mxu0
    %v309 = vlaneseq
    %v310 = vand.u32 %v309, 127
    %vm311 = vcmp.lt.s32.totalorder %v310, 0
    %v312 = vsub.s32 0, %v310
    %v313 = vsel %vm311, %v312, %v310
    %v314 = vshrl.u32 %v313, 6
    %v315 = vand.u32 %v313, 63
    %v316 = vsub.s32 0, %v315
    %v317 = vsel %vm311, %v316, %v315
    %vm318 = vcmp.ne.s32.totalorder %v317, 0
    %vm319 = vcmp.lt.s32.totalorder %v317, 0
    %vm320 = vmand %vm319, %vm318
    %v321 = vadd.s32 %v317, 64
    %v322 = vsel %vm320, %v321, %v317
    %323 = vrot.lane.b32.xlu0 %v241, 1
    %v324 = vpop.permute.xlu0 %323
    %325 = vrot.lane.b32.xlu0 %v246, 1
    %v326 = vpop.permute.xlu0 %325
    %v327 = vadd.s32 %v322, 4294967295
    %vm328 = vcmp.ge.s32.totalorder %v327, 0
    %vm329 = vcmp.lt.s32.totalorder %v327, 64
    %vm330 = vmand %vm328, %vm329
    %v331 = vsel %vm330, %v324, 0.0
    %v332 = vsel %vm330, %v326, 0.0
    %333 = vrot.lane.b32.xlu0 %v241, 127
    %v334 = vpop.permute.xlu0 %333
    %335 = vrot.lane.b32.xlu0 %v246, 127
    %v336 = vpop.permute.xlu0 %335
    %v337 = vadd.s32 %v322, 1
    %vm338 = vcmp.ge.s32.totalorder %v337, 0
    %vm339 = vcmp.lt.s32.totalorder %v337, 64
    %vm340 = vmand %vm338, %vm339
    %v341 = vsel %vm340, %v334, 0.0
    %v342 = vsel %vm340, %v336, 0.0
    %v343 = vld [vmem:[%s3] sm:$0xff]
    %v344 = vld [vmem:[%s3 + $0x8] sm:$0xff]
    %v345 = vld [vmem:[%s3 + $0x10] sm:$0xff]
    %v346 = vld [vmem:[%s3 + $0x18] sm:$0xff]
    %vm347 = vcmask 392192
    %v349 = vsel %vm347, %v343, 0
    %v352 = vsel %vm347, %v344, 0
    %v355 = vsel %vm347, %v345, 0
    %v358 = vsel %vm347, %v346, 0
    %360 = vmatprep.subr.mxu0 0.0
    %361 = vmatpush1.msra.mxu0 %v331
    %362 = vmatprep.subr.mxu0 0.0
    %363 = vmatpush1.msra.mxu0 %v332
    %364 = vmatprep.subr.mxu0 0.0
    %365 = vmatpush1.msra.mxu0 %v241
    %366 = vmatprep.subr.mxu0 0.0
    %367 = vmatpush1.msra.mxu0 %v246
    %368 = vmatprep.subr.mxu0 0.0
    %369 = vmatpush1.msra.mxu0 %v341
    %370 = vmatprep.subr.mxu0 0.0
    %371 = vmatpush1.msra.mxu0 %v342
    %372 = vmatprep.subr.mxu0 0.0
    %373 = vmatpush1.msra.mxu0 0.0
    %374 = vmatprep.subr.mxu0 0.0
    %375 = vmatpush1.msra.mxu0 0.0
    %376 = vmatprep.subr.mxu0 0.0
    %377 = vmatpush1.msra.mxu0 0.0
    %378 = vmatprep.subr.mxu0 0.0
    %379 = vmatpush1.msra.mxu0 0.0
    %380 = vmatprep.subr.mxu0 0.0
    %381 = vmatpush1.msra.mxu0 0.0
    %382 = vmatprep.subr.mxu0 0.0
    %383 = vmatpush1.msra.mxu0 0.0
    %384 = vmatprep.subr.mxu0 0.0
    %385 = vmatpush1.msra.mxu0 0.0
    %386 = vmatprep.subr.mxu0 0.0
    %387 = vmatpush1.msra.mxu0 0.0
    %388 = vmatprep.subr.mxu0 0.0
    %389 = vmatpush1.msra.mxu0 0.0
    %390 = vmatprep.subr.mxu0 0.0
    %391 = vmatpush1.msra.mxu0 0.0
    %392 = vmatprep.subr.mxu0 0.0
    %393 = vmatpush1.msra.mxu0 0.0
    %394 = vmatprep.subr.mxu0 0.0
    %395 = vmatpush1.msra.mxu0 0.0
    %396 = vmatprep.subr.mxu0 0.0
    %397 = vmatpush1.msra.mxu0 0.0
    %398 = vmatprep.subr.mxu0 0.0
    %399 = vmatpush1.msra.mxu0 0.0
    %400 = vmatprep.subr.mxu0 0.0
    %401 = vmatpush1.msra.mxu0 0.0
    %402 = vmatprep.subr.mxu0 0.0
    %403 = vmatpush1.msra.mxu0 0.0
    %404 = vmatprep.subr.mxu0 0.0
    %405 = vmatpush1.msra.mxu0 0.0
    %406 = vmatprep.subr.mxu0 0.0
    %407 = vmatpush1.msra.mxu0 0.0
    %408 = vmatprep.subr.mxu0 0.0
    %409 = vmatpush1.msra.mxu0 0.0
    %410 = vmatprep.subr.mxu0 0.0
    %411 = vmatpush1.msra.mxu0 0.0
    %412 = vmatprep.subr.mxu0 0.0
    %413 = vmatpush1.msra.mxu0 0.0
    %414 = vmatprep.subr.mxu0 0.0
    %415 = vmatpush1.msra.mxu0 0.0
    %416 = vmatprep.subr.mxu0 0.0
    %417 = vmatpush1.msra.mxu0 0.0
    %418 = vmatprep.subr.mxu0 0.0
    %419 = vmatpush1.msra.mxu0 0.0
    %420 = vmatprep.subr.mxu0 0.0
    %421 = vmatpush1.msra.mxu0 0.0
    %422 = vmatprep.subr.mxu0 0.0
    %423 = vmatpush1.msra.mxu0 0.0
    %424 = vmatprep.mubr.f32.mxu0 0.0
    %425 = vmatmul.mubr.f32.gmra.mrb[0].mxu0 %v349
    %v426 = vpop.f32.mrb[0].mxu0
    %v427 = vadd.f32 %v251, %v426
    %v428 = vpop.f32.mrb[0].mxu0
    %429 = vmatprep.mubr.f32.mxu0 0.0
    %430 = vmatmul.mubr.f32.gmra.mrb[0].mxu0 %v352
    %v431 = vpop.f32.mrb[0].mxu0
    %v432 = vadd.f32 %v256, %v431
    %v433 = vpop.f32.mrb[0].mxu0
    %434 = vmatprep.mubr.f32.mxu0 0.0
    %435 = vmatmul.mubr.f32.gmra.mrb[0].mxu0 %v355
    %v436 = vpop.f32.mrb[0].mxu0
    %v437 = vadd.f32 %v261, %v436
    %v438 = vpop.f32.mrb[0].mxu0
    %439 = vmatprep.mubr.f32.mxu0 0.0
    %440 = vmatmul.mubr.f32.gmra.mrb[0].mxu0 %v358
    %v441 = vpop.f32.mrb[0].mxu0
    %v442 = vadd.f32 %v266, %v441
    %v443 = vpop.f32.mrb[0].mxu0
    %444 = vdwg.mxu0
    %v445 = vtanh.pop %v427
    %v446 = vtanh.pop %v432
    %v447 = vxor.u32 %v437, 2147483648
    %v448 = vxor.u32 %v442, 2147483648
    %v449 = vmul.f32 %v447, 1.442695
    %v450 = vpow.pop %v449
    %v451 = vmul.f32 %v448, 1.442695
    %v452 = vpow.pop %v451
    %v453 = vadd.f32 %v450, 1.0
    %v454 = vadd.f32 %v452, 1.0
    %v455 = vrcp.pop %v453
    %v456 = vmul.f32 1.0, %v455
    %v457 = vrcp.pop %v454
    %v458 = vmul.f32 1.0, %v457
    %v459 = vmul.f32 %v445, %v456
    %v460 = vmul.f32 %v446, %v458
    %v461 = vld [vmem:[%s4] sm:$0xff]
    %v462 = vld [vmem:[%s4 + $0x8] sm:$0xff]
    %v463 = vld [vmem:[%s4 + $0x10] sm:$0xff]
    %v464 = vld [vmem:[%s5] sm:$0xff]
    %v465 = vld [vmem:[%s5 + $0x8] sm:$0xff]
    %v466 = vld [vmem:[%s5 + $0x10] sm:$0xff]
    %468 = vset.pattern.permute.xlu0 0
    %469 = vperm.xlu0 %468, %v464
    %v470 = vpop.permute.xlu0 %469
    %473 = vset.pattern.permute.xlu0 0
    %474 = vperm.xlu0 %473, %v465
    %v475 = vpop.permute.xlu0 %474
    %478 = vset.pattern.permute.xlu0 0
    %479 = vperm.xlu0 %478, %v466
    %v480 = vpop.permute.xlu0 %479
    %vm482 = vcmask 130048
    %v484 = vsel %vm482, %v461, 0
    %v487 = vsel %vm482, %v462, 0
    %v490 = vsel %vm482, %v463, 0
    %492 = vmatprep.subr.mxu0 0.0
    %493 = vmatpush1.msra.mxu0 %v459
    %494 = vmatprep.subr.mxu0 0.0
    %495 = vmatpush1.msra.mxu0 %v460
    %496 = vmatprep.subr.mxu0 0.0
    %497 = vmatpush1.msra.mxu0 0.0
    %498 = vmatprep.subr.mxu0 0.0
    %499 = vmatpush1.msra.mxu0 0.0
    %500 = vmatprep.subr.mxu0 0.0
    %501 = vmatpush1.msra.mxu0 0.0
    %502 = vmatprep.subr.mxu0 0.0
    %503 = vmatpush1.msra.mxu0 0.0
    %504 = vmatprep.subr.mxu0 0.0
    %505 = vmatpush1.msra.mxu0 0.0
    %506 = vmatprep.subr.mxu0 0.0
    %507 = vmatpush1.msra.mxu0 0.0
    %508 = vmatprep.subr.mxu0 0.0
    %509 = vmatpush1.msra.mxu0 0.0
    %510 = vmatprep.subr.mxu0 0.0
    %511 = vmatpush1.msra.mxu0 0.0
    %512 = vmatprep.subr.mxu0 0.0
    %513 = vmatpush1.msra.mxu0 0.0
    %514 = vmatprep.subr.mxu0 0.0
    %515 = vmatpush1.msra.mxu0 0.0
    %516 = vmatprep.subr.mxu0 0.0
    %517 = vmatpush1.msra.mxu0 0.0
    %518 = vmatprep.subr.mxu0 0.0
    %519 = vmatpush1.msra.mxu0 0.0
    %520 = vmatprep.subr.mxu0 0.0
    %521 = vmatpush1.msra.mxu0 0.0
    %522 = vmatprep.subr.mxu0 0.0
    %523 = vmatpush1.msra.mxu0 0.0
    %524 = vmatprep.subr.mxu0 0.0
    %525 = vmatpush1.msra.mxu0 0.0
    %526 = vmatprep.subr.mxu0 0.0
    %527 = vmatpush1.msra.mxu0 0.0
    %528 = vmatprep.subr.mxu0 0.0
    %529 = vmatpush1.msra.mxu0 0.0
    %530 = vmatprep.subr.mxu0 0.0
    %531 = vmatpush1.msra.mxu0 0.0
    %532 = vmatprep.subr.mxu0 0.0
    %533 = vmatpush1.msra.mxu0 0.0
    %534 = vmatprep.subr.mxu0 0.0
    %535 = vmatpush1.msra.mxu0 0.0
    %536 = vmatprep.subr.mxu0 0.0
    %537 = vmatpush1.msra.mxu0 0.0
    %538 = vmatprep.subr.mxu0 0.0
    %539 = vmatpush1.msra.mxu0 0.0
    %540 = vmatprep.subr.mxu0 0.0
    %541 = vmatpush1.msra.mxu0 0.0
    %542 = vmatprep.subr.mxu0 0.0
    %543 = vmatpush1.msra.mxu0 0.0
    %544 = vmatprep.subr.mxu0 0.0
    %545 = vmatpush1.msra.mxu0 0.0
    %546 = vmatprep.subr.mxu0 0.0
    %547 = vmatpush1.msra.mxu0 0.0
    %548 = vmatprep.subr.mxu0 0.0
    %549 = vmatpush1.msra.mxu0 0.0
    %550 = vmatprep.subr.mxu0 0.0
    %551 = vmatpush1.msra.mxu0 0.0
    %552 = vmatprep.subr.mxu0 0.0
    %553 = vmatpush1.msra.mxu0 0.0
    %554 = vmatprep.subr.mxu0 0.0
    %555 = vmatpush1.msra.mxu0 0.0
    %556 = vmatprep.mubr.f32.mxu0 0.0
    %557 = vmatmul.mubr.f32.gmra.mrb[0].mxu0 %v484
    %v558 = vpop.f32.mrb[0].mxu0
    %v559 = vadd.f32 %v470, %v558
    %v560 = vpop.f32.mrb[0].mxu0
    %561 = vmatprep.mubr.f32.mxu0 0.0
    %562 = vmatmul.mubr.f32.gmra.mrb[0].mxu0 %v487
    %v563 = vpop.f32.mrb[0].mxu0
    %v564 = vadd.f32 %v475, %v563
    %v565 = vpop.f32.mrb[0].mxu0
    %566 = vmatprep.mubr.f32.mxu0 0.0
    %567 = vmatmul.mubr.f32.gmra.mrb[0].mxu0 %v490
    %v568 = vpop.f32.mrb[0].mxu0
    %v569 = vadd.f32 %v480, %v568
    %v570 = vpop.f32.mrb[0].mxu0
    %571 = vdwg.mxu0
    %v572 = vadd.f32 %v241, %v559
    %v573 = vadd.f32 %v246, %v564
    %v574 = vadd.f32 %v569, 0.0
    %575 = vrot.lane.b32.xlu0 %v572, 2
    %v576 = vpop.permute.xlu0 %575
    %577 = vrot.lane.b32.xlu0 %v573, 2
    %v578 = vpop.permute.xlu0 %577
    %v579 = vadd.s32 %v322, 4294967294
    %vm580 = vcmp.ge.s32.totalorder %v579, 0
    %vm581 = vcmp.lt.s32.totalorder %v579, 64
    %vm582 = vmand %vm580, %vm581
    %v583 = vsel %vm582, %v576, 0.0
    %v584 = vsel %vm582, %v578, 0.0
    %585 = vrot.lane.b32.xlu0 %v572, 126
    %v586 = vpop.permute.xlu0 %585
    %587 = vrot.lane.b32.xlu0 %v573, 126
    %v588 = vpop.permute.xlu0 %587
    %v589 = vadd.s32 %v322, 2
    %vm590 = vcmp.ge.s32.totalorder %v589, 0
    %vm591 = vcmp.lt.s32.totalorder %v589, 64
    %vm592 = vmand %vm590, %vm591
    %v593 = vsel %vm592, %v586, 0.0
    %v594 = vsel %vm592, %v588, 0.0
    %s595 = scalar_lea.vmem %s3, 32
    %v596 = vld [vmem:[%s595] sm:$0xff]
    %v597 = vld [vmem:[%s595 + $0x8] sm:$0xff]
    %v598 = vld [vmem:[%s595 + $0x10] sm:$0xff]
    %v599 = vld [vmem:[%s595 + $0x18] sm:$0xff]
    %v601 = vsel %vm347, %v596, 0
    %v604 = vsel %vm347, %v597, 0
    %v607 = vsel %vm347, %v598, 0
    %v610 = vsel %vm347, %v599, 0
    %612 = vmatprep.subr.mxu0 0.0
    %613 = vmatpush1.msra.mxu0 %v583
    %614 = vmatprep.subr.mxu0 0.0
    %615 = vmatpush1.msra.mxu0 %v584
    %616 = vmatprep.subr.mxu0 0.0
    %617 = vmatpush1.msra.mxu0 %v572
    %618 = vmatprep.subr.mxu0 0.0
    %619 = vmatpush1.msra.mxu0 %v573
    %620 = vmatprep.subr.mxu0 0.0
    %621 = vmatpush1.msra.mxu0 %v593
    %622 = vmatprep.subr.mxu0 0.0
    %623 = vmatpush1.msra.mxu0 %v594
    %624 = vmatprep.subr.mxu0 0.0
    %625 = vmatpush1.msra.mxu0 0.0
    %626 = vmatprep.subr.mxu0 0.0
    %627 = vmatpush1.msra.mxu0 0.0
    %628 = vmatprep.subr.mxu0 0.0
    %629 = vmatpush1.msra.mxu0 0.0
    %630 = vmatprep.subr.mxu0 0.0
    %631 = vmatpush1.msra.mxu0 0.0
    %632 = vmatprep.subr.mxu0 0.0
    %633 = vmatpush1.msra.mxu0 0.0
    %634 = vmatprep.subr.mxu0 0.0
    %635 = vmatpush1.msra.mxu0 0.0
    %636 = vmatprep.subr.mxu0 0.0
    %637 = vmatpush1.msra.mxu0 0.0
    %638 = vmatprep.subr.mxu0 0.0
    %639 = vmatpush1.msra.mxu0 0.0
    %640 = vmatprep.subr.mxu0 0.0
    %641 = vmatpush1.msra.mxu0 0.0
    %642 = vmatprep.subr.mxu0 0.0
    %643 = vmatpush1.msra.mxu0 0.0
    %644 = vmatprep.subr.mxu0 0.0
    %645 = vmatpush1.msra.mxu0 0.0
    %646 = vmatprep.subr.mxu0 0.0
    %647 = vmatpush1.msra.mxu0 0.0
    %648 = vmatprep.subr.mxu0 0.0
    %649 = vmatpush1.msra.mxu0 0.0
    %650 = vmatprep.subr.mxu0 0.0
    %651 = vmatpush1.msra.mxu0 0.0
    %652 = vmatprep.subr.mxu0 0.0
    %653 = vmatpush1.msra.mxu0 0.0
    %654 = vmatprep.subr.mxu0 0.0
    %655 = vmatpush1.msra.mxu0 0.0
    %656 = vmatprep.subr.mxu0 0.0
    %657 = vmatpush1.msra.mxu0 0.0
    %658 = vmatprep.subr.mxu0 0.0
    %659 = vmatpush1.msra.mxu0 0.0
    %660 = vmatprep.subr.mxu0 0.0
    %661 = vmatpush1.msra.mxu0 0.0
    %662 = vmatprep.subr.mxu0 0.0
    %663 = vmatpush1.msra.mxu0 0.0
    %664 = vmatprep.subr.mxu0 0.0
    %665 = vmatpush1.msra.mxu0 0.0
    %666 = vmatprep.subr.mxu0 0.0
    %667 = vmatpush1.msra.mxu0 0.0
    %668 = vmatprep.subr.mxu0 0.0
    %669 = vmatpush1.msra.mxu0 0.0
    %670 = vmatprep.subr.mxu0 0.0
    %671 = vmatpush1.msra.mxu0 0.0
    %672 = vmatprep.subr.mxu0 0.0
    %673 = vmatpush1.msra.mxu0 0.0
    %674 = vmatprep.subr.mxu0 0.0
    %675 = vmatpush1.msra.mxu0 0.0
    %676 = vmatprep.mubr.f32.mxu0 0.0
    %677 = vmatmul.mubr.f32.gmra.mrb[0].mxu0 %v601
    %v678 = vpop.f32.mrb[0].mxu0
    %v679 = vadd.f32 %v271, %v678
    %v680 = vpop.f32.mrb[0].mxu0
    %681 = vmatprep.mubr.f32.mxu0 0.0
    %682 = vmatmul.mubr.f32.gmra.mrb[0].mxu0 %v604
    %v683 = vpop.f32.mrb[0].mxu0
    %v684 = vadd.f32 %v276, %v683
    %v685 = vpop.f32.mrb[0].mxu0
    %686 = vmatprep.mubr.f32.mxu0 0.0
    %687 = vmatmul.mubr.f32.gmra.mrb[0].mxu0 %v607
    %v688 = vpop.f32.mrb[0].mxu0
    %v689 = vadd.f32 %v281, %v688
    %v690 = vpop.f32.mrb[0].mxu0
    %691 = vmatprep.mubr.f32.mxu0 0.0
    %692 = vmatmul.mubr.f32.gmra.mrb[0].mxu0 %v610
    %v693 = vpop.f32.mrb[0].mxu0
    %v694 = vadd.f32 %v286, %v693
    %v695 = vpop.f32.mrb[0].mxu0
    %696 = vdwg.mxu0
    %v697 = vtanh.pop %v679
    %v698 = vtanh.pop %v684
    %v699 = vxor.u32 %v689, 2147483648
    %v700 = vxor.u32 %v694, 2147483648
    %v701 = vmul.f32 %v699, 1.442695
    %v702 = vpow.pop %v701
    %v703 = vmul.f32 %v700, 1.442695
    %v704 = vpow.pop %v703
    %v705 = vadd.f32 %v702, 1.0
    %v706 = vadd.f32 %v704, 1.0
    %v707 = vrcp.pop %v705
    %v708 = vmul.f32 1.0, %v707
    %v709 = vrcp.pop %v706
    %v710 = vmul.f32 1.0, %v709
    %v711 = vmul.f32 %v697, %v708
    %v712 = vmul.f32 %v698, %v710
    %s713 = scalar_lea.vmem %s4, 24
    %v714 = vld [vmem:[%s713] sm:$0xff]
    %v715 = vld [vmem:[%s713 + $0x8] sm:$0xff]
    %v716 = vld [vmem:[%s713 + $0x10] sm:$0xff]
    %s717 = scalar_lea.vmem %s5, 24
    %v718 = vld [vmem:[%s717] sm:$0xff]
    %v719 = vld [vmem:[%s717 + $0x8] sm:$0xff]
    %v720 = vld [vmem:[%s717 + $0x10] sm:$0xff]
    %722 = vset.pattern.permute.xlu0 0
    %723 = vperm.xlu0 %722, %v718
    %v724 = vpop.permute.xlu0 %723
    %727 = vset.pattern.permute.xlu0 0
    %728 = vperm.xlu0 %727, %v719
    %v729 = vpop.permute.xlu0 %728
    %732 = vset.pattern.permute.xlu0 0
    %733 = vperm.xlu0 %732, %v720
    %v734 = vpop.permute.xlu0 %733
    %v737 = vsel %vm482, %v714, 0
    %v740 = vsel %vm482, %v715, 0
    %v743 = vsel %vm482, %v716, 0
    %745 = vmatprep.subr.mxu0 0.0
    %746 = vmatpush1.msra.mxu0 %v711
    %747 = vmatprep.subr.mxu0 0.0
    %748 = vmatpush1.msra.mxu0 %v712
    %749 = vmatprep.subr.mxu0 0.0
    %750 = vmatpush1.msra.mxu0 0.0
    %751 = vmatprep.subr.mxu0 0.0
    %752 = vmatpush1.msra.mxu0 0.0
    %753 = vmatprep.subr.mxu0 0.0
    %754 = vmatpush1.msra.mxu0 0.0
    %755 = vmatprep.subr.mxu0 0.0
    %756 = vmatpush1.msra.mxu0 0.0
    %757 = vmatprep.subr.mxu0 0.0
    %758 = vmatpush1.msra.mxu0 0.0
    %759 = vmatprep.subr.mxu0 0.0
    %760 = vmatpush1.msra.mxu0 0.0
    %761 = vmatprep.subr.mxu0 0.0
    %762 = vmatpush1.msra.mxu0 0.0
    %763 = vmatprep.subr.mxu0 0.0
    %764 = vmatpush1.msra.mxu0 0.0
    %765 = vmatprep.subr.mxu0 0.0
    %766 = vmatpush1.msra.mxu0 0.0
    %767 = vmatprep.subr.mxu0 0.0
    %768 = vmatpush1.msra.mxu0 0.0
    %769 = vmatprep.subr.mxu0 0.0
    %770 = vmatpush1.msra.mxu0 0.0
    %771 = vmatprep.subr.mxu0 0.0
    %772 = vmatpush1.msra.mxu0 0.0
    %773 = vmatprep.subr.mxu0 0.0
    %774 = vmatpush1.msra.mxu0 0.0
    %775 = vmatprep.subr.mxu0 0.0
    %776 = vmatpush1.msra.mxu0 0.0
    %777 = vmatprep.subr.mxu0 0.0
    %778 = vmatpush1.msra.mxu0 0.0
    %779 = vmatprep.subr.mxu0 0.0
    %780 = vmatpush1.msra.mxu0 0.0
    %781 = vmatprep.subr.mxu0 0.0
    %782 = vmatpush1.msra.mxu0 0.0
    %783 = vmatprep.subr.mxu0 0.0
    %784 = vmatpush1.msra.mxu0 0.0
    %785 = vmatprep.subr.mxu0 0.0
    %786 = vmatpush1.msra.mxu0 0.0
    %787 = vmatprep.subr.mxu0 0.0
    %788 = vmatpush1.msra.mxu0 0.0
    %789 = vmatprep.subr.mxu0 0.0
    %790 = vmatpush1.msra.mxu0 0.0
    %791 = vmatprep.subr.mxu0 0.0
    %792 = vmatpush1.msra.mxu0 0.0
    %793 = vmatprep.subr.mxu0 0.0
    %794 = vmatpush1.msra.mxu0 0.0
    %795 = vmatprep.subr.mxu0 0.0
    %796 = vmatpush1.msra.mxu0 0.0
    %797 = vmatprep.subr.mxu0 0.0
    %798 = vmatpush1.msra.mxu0 0.0
    %799 = vmatprep.subr.mxu0 0.0
    %800 = vmatpush1.msra.mxu0 0.0
    %801 = vmatprep.subr.mxu0 0.0
    %802 = vmatpush1.msra.mxu0 0.0
    %803 = vmatprep.subr.mxu0 0.0
    %804 = vmatpush1.msra.mxu0 0.0
    %805 = vmatprep.subr.mxu0 0.0
    %806 = vmatpush1.msra.mxu0 0.0
    %807 = vmatprep.subr.mxu0 0.0
    %808 = vmatpush1.msra.mxu0 0.0
    %809 = vmatprep.mubr.f32.mxu0 0.0
    %810 = vmatmul.mubr.f32.gmra.mrb[0].mxu0 %v737
    %v811 = vpop.f32.mrb[0].mxu0
    %v812 = vadd.f32 %v724, %v811
    %v813 = vpop.f32.mrb[0].mxu0
    %814 = vmatprep.mubr.f32.mxu0 0.0
    %815 = vmatmul.mubr.f32.gmra.mrb[0].mxu0 %v740
    %v816 = vpop.f32.mrb[0].mxu0
    %v817 = vadd.f32 %v729, %v816
    %v818 = vpop.f32.mrb[0].mxu0
    %819 = vmatprep.mubr.f32.mxu0 0.0
    %820 = vmatmul.mubr.f32.gmra.mrb[0].mxu0 %v743
    %v821 = vpop.f32.mrb[0].mxu0
    %v822 = vadd.f32 %v734, %v821
    %v823 = vpop.f32.mrb[0].mxu0
    %824 = vdwg.mxu0
    %v825 = vadd.f32 %v572, %v812
    %v826 = vadd.f32 %v573, %v817
    %v827 = vadd.f32 %v574, %v822
    %828 = vrot.lane.b32.xlu0 %v825, 4
    %v829 = vpop.permute.xlu0 %828
    %830 = vrot.lane.b32.xlu0 %v826, 4
    %v831 = vpop.permute.xlu0 %830
    %v832 = vadd.s32 %v322, 4294967292
    %vm833 = vcmp.ge.s32.totalorder %v832, 0
    %vm834 = vcmp.lt.s32.totalorder %v832, 64
    %vm835 = vmand %vm833, %vm834
    %v836 = vsel %vm835, %v829, 0.0
    %v837 = vsel %vm835, %v831, 0.0
    %838 = vrot.lane.b32.xlu0 %v825, 124
    %v839 = vpop.permute.xlu0 %838
    %840 = vrot.lane.b32.xlu0 %v826, 124
    %v841 = vpop.permute.xlu0 %840
    %v842 = vadd.s32 %v322, 4
    %vm843 = vcmp.ge.s32.totalorder %v842, 0
    %vm844 = vcmp.lt.s32.totalorder %v842, 64
    %vm845 = vmand %vm843, %vm844
    %v846 = vsel %vm845, %v839, 0.0
    %v847 = vsel %vm845, %v841, 0.0
    %s848 = scalar_lea.vmem %s3, 64
    %v849 = vld [vmem:[%s848] sm:$0xff]
    %v850 = vld [vmem:[%s848 + $0x8] sm:$0xff]
    %v851 = vld [vmem:[%s848 + $0x10] sm:$0xff]
    %v852 = vld [vmem:[%s848 + $0x18] sm:$0xff]
    %v854 = vsel %vm347, %v849, 0
    %v857 = vsel %vm347, %v850, 0
    %v860 = vsel %vm347, %v851, 0
    %v863 = vsel %vm347, %v852, 0
    %865 = vmatprep.subr.mxu0 0.0
    %866 = vmatpush1.msra.mxu0 %v836
    %867 = vmatprep.subr.mxu0 0.0
    %868 = vmatpush1.msra.mxu0 %v837
    %869 = vmatprep.subr.mxu0 0.0
    %870 = vmatpush1.msra.mxu0 %v825
    %871 = vmatprep.subr.mxu0 0.0
    %872 = vmatpush1.msra.mxu0 %v826
    %873 = vmatprep.subr.mxu0 0.0
    %874 = vmatpush1.msra.mxu0 %v846
    %875 = vmatprep.subr.mxu0 0.0
    %876 = vmatpush1.msra.mxu0 %v847
    %877 = vmatprep.subr.mxu0 0.0
    %878 = vmatpush1.msra.mxu0 0.0
    %879 = vmatprep.subr.mxu0 0.0
    %880 = vmatpush1.msra.mxu0 0.0
    %881 = vmatprep.subr.mxu0 0.0
    %882 = vmatpush1.msra.mxu0 0.0
    %883 = vmatprep.subr.mxu0 0.0
    %884 = vmatpush1.msra.mxu0 0.0
    %885 = vmatprep.subr.mxu0 0.0
    %886 = vmatpush1.msra.mxu0 0.0
    %887 = vmatprep.subr.mxu0 0.0
    %888 = vmatpush1.msra.mxu0 0.0
    %889 = vmatprep.subr.mxu0 0.0
    %890 = vmatpush1.msra.mxu0 0.0
    %891 = vmatprep.subr.mxu0 0.0
    %892 = vmatpush1.msra.mxu0 0.0
    %893 = vmatprep.subr.mxu0 0.0
    %894 = vmatpush1.msra.mxu0 0.0
    %895 = vmatprep.subr.mxu0 0.0
    %896 = vmatpush1.msra.mxu0 0.0
    %897 = vmatprep.subr.mxu0 0.0
    %898 = vmatpush1.msra.mxu0 0.0
    %899 = vmatprep.subr.mxu0 0.0
    %900 = vmatpush1.msra.mxu0 0.0
    %901 = vmatprep.subr.mxu0 0.0
    %902 = vmatpush1.msra.mxu0 0.0
    %903 = vmatprep.subr.mxu0 0.0
    %904 = vmatpush1.msra.mxu0 0.0
    %905 = vmatprep.subr.mxu0 0.0
    %906 = vmatpush1.msra.mxu0 0.0
    %907 = vmatprep.subr.mxu0 0.0
    %908 = vmatpush1.msra.mxu0 0.0
    %909 = vmatprep.subr.mxu0 0.0
    %910 = vmatpush1.msra.mxu0 0.0
    %911 = vmatprep.subr.mxu0 0.0
    %912 = vmatpush1.msra.mxu0 0.0
    %913 = vmatprep.subr.mxu0 0.0
    %914 = vmatpush1.msra.mxu0 0.0
    %915 = vmatprep.subr.mxu0 0.0
    %916 = vmatpush1.msra.mxu0 0.0
    %917 = vmatprep.subr.mxu0 0.0
    %918 = vmatpush1.msra.mxu0 0.0
    %919 = vmatprep.subr.mxu0 0.0
    %920 = vmatpush1.msra.mxu0 0.0
    %921 = vmatprep.subr.mxu0 0.0
    %922 = vmatpush1.msra.mxu0 0.0
    %923 = vmatprep.subr.mxu0 0.0
    %924 = vmatpush1.msra.mxu0 0.0
    %925 = vmatprep.subr.mxu0 0.0
    %926 = vmatpush1.msra.mxu0 0.0
    %927 = vmatprep.subr.mxu0 0.0
    %928 = vmatpush1.msra.mxu0 0.0
    %929 = vmatprep.mubr.f32.mxu0 0.0
    %930 = vmatmul.mubr.f32.gmra.mrb[0].mxu0 %v854
    %v931 = vpop.f32.mrb[0].mxu0
    %v932 = vadd.f32 %v291, %v931
    %v933 = vpop.f32.mrb[0].mxu0
    %934 = vmatprep.mubr.f32.mxu0 0.0
    %935 = vmatmul.mubr.f32.gmra.mrb[0].mxu0 %v857
    %v936 = vpop.f32.mrb[0].mxu0
    %v937 = vadd.f32 %v296, %v936
    %v938 = vpop.f32.mrb[0].mxu0
    %939 = vmatprep.mubr.f32.mxu0 0.0
    %940 = vmatmul.mubr.f32.gmra.mrb[0].mxu0 %v860
    %v941 = vpop.f32.mrb[0].mxu0
    %v942 = vadd.f32 %v301, %v941
    %v943 = vpop.f32.mrb[0].mxu0
    %944 = vmatprep.mubr.f32.mxu0 0.0
    %945 = vmatmul.mubr.f32.gmra.mrb[0].mxu0 %v863
    %v946 = vpop.f32.mrb[0].mxu0
    %v947 = vadd.f32 %v306, %v946
    %v948 = vpop.f32.mrb[0].mxu0
    %949 = vdwg.mxu0
    %v950 = vtanh.pop %v932
    %v951 = vtanh.pop %v937
    %v952 = vxor.u32 %v942, 2147483648
    %v953 = vxor.u32 %v947, 2147483648
    %v954 = vmul.f32 %v952, 1.442695
    %v955 = vpow.pop %v954
    %v956 = vmul.f32 %v953, 1.442695
    %v957 = vpow.pop %v956
    %v958 = vadd.f32 %v955, 1.0
    %v959 = vadd.f32 %v957, 1.0
    %v960 = vrcp.pop %v958
    %v961 = vmul.f32 1.0, %v960
    %v962 = vrcp.pop %v959
    %v963 = vmul.f32 1.0, %v962
    %v964 = vmul.f32 %v950, %v961
    %v965 = vmul.f32 %v951, %v963
    %s966 = scalar_lea.vmem %s4, 48
    %v967 = vld [vmem:[%s966 + $0x10] sm:$0xff]
    %v969 = vsel %vm482, %v967, 0
    %971 = vmatprep.subr.mxu0 0.0
    %972 = vmatpush1.msra.mxu0 %v964
    %973 = vmatprep.subr.mxu0 0.0
    %974 = vmatpush1.msra.mxu0 %v965
    %975 = vmatprep.subr.mxu0 0.0
    %976 = vmatpush1.msra.mxu0 0.0
    %977 = vmatprep.subr.mxu0 0.0
    %978 = vmatpush1.msra.mxu0 0.0
    %979 = vmatprep.subr.mxu0 0.0
    %980 = vmatpush1.msra.mxu0 0.0
    %981 = vmatprep.subr.mxu0 0.0
    %982 = vmatpush1.msra.mxu0 0.0
    %983 = vmatprep.subr.mxu0 0.0
    %984 = vmatpush1.msra.mxu0 0.0
    %985 = vmatprep.subr.mxu0 0.0
    %986 = vmatpush1.msra.mxu0 0.0
    %987 = vmatprep.subr.mxu0 0.0
    %988 = vmatpush1.msra.mxu0 0.0
    %989 = vmatprep.subr.mxu0 0.0
    %990 = vmatpush1.msra.mxu0 0.0
    %991 = vmatprep.subr.mxu0 0.0
    %992 = vmatpush1.msra.mxu0 0.0
    %993 = vmatprep.subr.mxu0 0.0
    %994 = vmatpush1.msra.mxu0 0.0
    %995 = vmatprep.subr.mxu0 0.0
    %996 = vmatpush1.msra.mxu0 0.0
    %997 = vmatprep.subr.mxu0 0.0
    %998 = vmatpush1.msra.mxu0 0.0
    %999 = vmatprep.subr.mxu0 0.0
    %1000 = vmatpush1.msra.mxu0 0.0
    %1001 = vmatprep.subr.mxu0 0.0
    %1002 = vmatpush1.msra.mxu0 0.0
    %1003 = vmatprep.subr.mxu0 0.0
    %1004 = vmatpush1.msra.mxu0 0.0
    %1005 = vmatprep.subr.mxu0 0.0
    %1006 = vmatpush1.msra.mxu0 0.0
    %1007 = vmatprep.subr.mxu0 0.0
    %1008 = vmatpush1.msra.mxu0 0.0
    %1009 = vmatprep.subr.mxu0 0.0
    %1010 = vmatpush1.msra.mxu0 0.0
    %1011 = vmatprep.subr.mxu0 0.0
    %1012 = vmatpush1.msra.mxu0 0.0
    %1013 = vmatprep.subr.mxu0 0.0
    %1014 = vmatpush1.msra.mxu0 0.0
    %1015 = vmatprep.subr.mxu0 0.0
    %1016 = vmatpush1.msra.mxu0 0.0
    %1017 = vmatprep.subr.mxu0 0.0
    %1018 = vmatpush1.msra.mxu0 0.0
    %1019 = vmatprep.subr.mxu0 0.0
    %1020 = vmatpush1.msra.mxu0 0.0
    %1021 = vmatprep.subr.mxu0 0.0
    %1022 = vmatpush1.msra.mxu0 0.0
    %1023 = vmatprep.subr.mxu0 0.0
    %1024 = vmatpush1.msra.mxu0 0.0
    %1025 = vmatprep.subr.mxu0 0.0
    %1026 = vmatpush1.msra.mxu0 0.0
    %1027 = vmatprep.subr.mxu0 0.0
    %1028 = vmatpush1.msra.mxu0 0.0
    %1029 = vmatprep.subr.mxu0 0.0
    %1030 = vmatpush1.msra.mxu0 0.0
    %1031 = vmatprep.subr.mxu0 0.0
    %1032 = vmatpush1.msra.mxu0 0.0
    %1033 = vmatprep.subr.mxu0 0.0
    %1034 = vmatpush1.msra.mxu0 0.0
    %1035 = vmatprep.mubr.f32.mxu0 0.0
    %1036 = vmatmul.mubr.f32.gmra.mrb[0].mxu0 %v969
    %v1037 = vpop.f32.mrb[0].mxu0
    %v1038 = vadd.f32 0.0, %v1037
    %v1039 = vpop.f32.mrb[0].mxu0
    %1040 = vdwg.mxu0
    %v1041 = vadd.f32 %v827, %v1038
    %v1042 = vld [vmem:[%s6] sm:$0xff]
    %1044 = vset.pattern.permute.xlu0 0
    %1045 = vperm.xlu0 %1044, %v1042
    %v1046 = vpop.permute.xlu0 %1045
    %v1048 = vadd.f32 %v1041, %v1046
    %1049 = vst [vmem:[#allocation2] sm:$0xff] %v1048
    // Predicated region
    $region30: #{tpu_custom_call.1} parent=1 // pred_check
      _
    $region31: #{tpu_custom_call.1} parent=1 // pred_check_branch
      %1051 = sbr.rel (0) target = $region33
    $region32: #{tpu_custom_call.1} parent=1 // pred_region
      %s1053 = ssub.s32 128, 128
      %1054 = vsyncadd [#allocation3], %s1053
      %s1056 = sshll.u32 [#allocation2], 4
      %s1057 = int_to_ptr.vmem [resolvable:$true] %s1056
      %1059 = dma.vmem_to_hbm [thread:$0]  %s1057, 128, %s7, [#allocation3]
    $region33: #{tpu_custom_call.1} parent=1 // pred_fallthru
      _
    // Predicated region
    $region34: #{tpu_custom_call.1} parent=1 // pred_check
      _
    $region35: #{tpu_custom_call.1} parent=1 // pred_check_branch
      %1061 = sbr.rel (0) target = $region37
    $region36: #{tpu_custom_call.1} parent=1 // pred_region
      %1062 = dma.done [#allocation3], 128
    $region37: #{tpu_custom_call.1} parent=1 // pred_fallthru
      _
    %1063 = vsyncpa [#allocation3], 1

</llo_original>
